<compile_context>
chip_gen: v6e
topology: v6e:2x2x1
jax: 0.10.0
libtpu: 0.0.40
codegen_flags: <defaults>
</compile_context>

<pallas_src>
import functools

import jax
import jax.numpy as jnp
import numpy as np
from jax.experimental import pallas as pl
from jax.experimental.pallas import tpu as pltpu

OUT_PAD = 128  # lane-dense output width (>= n_actions)


def _mlp_kernel(x_ref, w1_ref, b1_ref, w2t_ref, b2p_ref, q_ref, a_ref):
    x = x_ref[...]                                     # (tb, in_f) f32
    tb, in_f = x.shape
    hidden = w1_ref.shape[1]
    n_actions = w2t_ref.shape[0]
    out_pad = q_ref.shape[1]

    # ---- Layer 1: tiny-K matmul as `in_f` VPU FMAs (MXU stays idle) ----
    h = jnp.broadcast_to(b1_ref[...], (tb, hidden))
    for k in range(in_f):                              # in_f = 4, fully unrolled
        h = h + x[:, k:k + 1] * w1_ref[k:k + 1, :]     # (tb,1)*(1,hidden)
    h = jnp.tanh(h)                                    # EUP transcendental

    # ---- Layer 2: per-action lane reductions into a lane-dense slab ----
    lane = jax.lax.broadcasted_iota(jnp.int32, (tb, out_pad), 1)
    q = jnp.broadcast_to(b2p_ref[...], (tb, out_pad))  # bias, zero-padded lanes
    for a in range(n_actions):                         # n_actions = 2
        qa = jnp.sum(h * w2t_ref[a:a + 1, :], axis=-1, keepdims=True)  # (tb,1)
        q = q + jnp.where(lane == a, qa, 0.0)
    q_ref[...] = q.astype(q_ref.dtype)                 # full-width, unmasked store

    # ---- Fused argmax over the valid action lanes (first-max tie break) ----
    q_m = jnp.where(lane < n_actions, q, -jnp.inf)
    qmax = jnp.max(q_m, axis=-1, keepdims=True)
    idx = jnp.where((q_m == qmax) & (lane < n_actions), lane, out_pad)
    amax = jnp.min(idx, axis=-1, keepdims=True)        # (tb,1) int32
    a_ref[...] = jnp.broadcast_to(amax, (tb, out_pad)).astype(a_ref.dtype)


@functools.partial(jax.jit, static_argnames=("tile_b",))
def net_forward(x, w1, b1, w2, b2, *, tile_b=512):
    """Forward pass of Net (+ fused argmax) as a single Pallas kernel.

    x:  (B, in_features) f32
    w1: (in_features, hidden), b1: (1, hidden)
    w2: (hidden, n_actions),   b2: (1, n_actions)
    returns (q_values: (B, n_actions) f32, actions: (B,) int32)
    """
    B, in_f = x.shape
    hidden = w1.shape[1]
    n_actions = w2.shape[1]
    assert n_actions <= OUT_PAD

    # Pad batch to a multiple of 8 sublanes, then to a multiple of the tile.
    b_pad = max(8, ((B + 7) // 8) * 8)
    tb = min(tile_b, b_pad)
    b_pad = ((b_pad + tb - 1) // tb) * tb
    x_pad = jnp.pad(x, ((0, b_pad - B), (0, 0)))

    # Repack weights for the kernel: w2 transposed, b2 lane-padded to OUT_PAD.
    w2t = jnp.transpose(w2)                              # (n_actions, hidden)
    b2p = jnp.pad(b2, ((0, 0), (0, OUT_PAD - n_actions)))  # (1, OUT_PAD)

    grid = (b_pad // tb,)
    q_pad, a_pad = pl.pallas_call(
        _mlp_kernel,
        out_shape=(
            jax.ShapeDtypeStruct((b_pad, OUT_PAD), jnp.float32),
            jax.ShapeDtypeStruct((b_pad, OUT_PAD), jnp.int32),
        ),
        grid=grid,
        in_specs=[
            pl.BlockSpec((tb, in_f), lambda i: (i, 0)),        # x: tiled on batch
            pl.BlockSpec((in_f, hidden), lambda i: (0, 0)),    # w1: resident
            pl.BlockSpec((1, hidden), lambda i: (0, 0)),       # b1: resident
            pl.BlockSpec((n_actions, hidden), lambda i: (0, 0)),  # w2^T: resident
            pl.BlockSpec((1, OUT_PAD), lambda i: (0, 0)),      # b2 (lane-padded)
        ],
        out_specs=(
            pl.BlockSpec((tb, OUT_PAD), lambda i: (i, 0)),     # q slab (lane-dense)
            pl.BlockSpec((tb, OUT_PAD), lambda i: (i, 0)),     # argmax slab
        ),
        compiler_params=pltpu.CompilerParams(
            dimension_semantics=("parallel",),                  # shards across v7x TCs
        ),
    )(x_pad, w1, b1, w2t, b2p)

    q_values = q_pad[:B, :n_actions]
    actions = a_pad[:B, 0]
    return q_values, actions


def init_params(key, in_features=4, hidden=64, n_actions=2):
    """Deterministic init mimicking nn.Linear default (uniform +-1/sqrt(fan_in))."""
    k1, k2, k3, k4 = jax.random.split(key, 4)
    bound1 = 1.0 / np.sqrt(in_features)
    bound2 = 1.0 / np.sqrt(hidden)
    w1 = jax.random.uniform(k1, (in_features, hidden), jnp.float32, -bound1, bound1)
    b1 = jax.random.uniform(k2, (1, hidden), jnp.float32, -bound1, bound1)
    w2 = jax.random.uniform(k3, (hidden, n_actions), jnp.float32, -bound2, bound2)
    b2 = jax.random.uniform(k4, (1, n_actions), jnp.float32, -bound2, bound2)
    return w1, b1, w2, b2


if __name__ == "__main__":
    key = jax.random.PRNGKey(0)
    k_params, k_x = jax.random.split(key)

    in_features = 4   # CartPole-v0 observation space shape (4,)
    hidden = 64
    n_actions = 2     # CartPole-v0 action space n
    batch = 2

    w1, b1, w2, b2 = init_params(k_params, in_features, hidden, n_actions)
    x = jax.random.normal(k_x, (batch, in_features), jnp.float32)

    q_values, actions = net_forward(x, w1, b1, w2, b2)
    jax.block_until_ready((q_values, actions))

    # Reference check in plain JAX (same math as the PyTorch module).
    q_ref = jnp.tanh(x @ w1 + b1) @ w2 + b2
    np.testing.assert_allclose(np.asarray(q_values), np.asarray(q_ref),
                               rtol=1e-5, atol=1e-5)
    a_ref = jnp.argmax(q_ref, axis=1).astype(jnp.int32)
    np.testing.assert_array_equal(np.asarray(actions), np.asarray(a_ref))

    print("KERNEL_OK")
</pallas_src>

<mosaic_0001>
module attributes {stable_mosaic.version = 11 : i64} {
  func.func @_mlp_kernel(%arg0: i32, %arg1: memref<8x4xf32, #tpu.memory_space<vmem>>, %arg2: memref<4x64xf32, #tpu.memory_space<vmem>>, %arg3: memref<1x64xf32, #tpu.memory_space<vmem>>, %arg4: memref<2x64xf32, #tpu.memory_space<vmem>>, %arg5: memref<1x128xf32, #tpu.memory_space<vmem>>, %arg6: memref<8x128xf32, #tpu.memory_space<vmem>>, %arg7: memref<8x128xi32, #tpu.memory_space<vmem>>) attributes {dimension_semantics = [#tpu.dimension_semantics<parallel>], iteration_bounds = array<i64: 1>, scalar_prefetch = 0 : i64, scratch_operands = 0 : i64, tpu.core_type = #tpu.core_type<tc>, window_params = [{transform_indices = @transform_0, window_bounds = array<i64: 8, 4>}, {pipeline_mode = #tpu.pipeline_mode<synchronous>, transform_indices = @transform_1, window_bounds = array<i64: 4, 64>}, {pipeline_mode = #tpu.pipeline_mode<synchronous>, transform_indices = @transform_2, window_bounds = array<i64: 1, 64>}, {pipeline_mode = #tpu.pipeline_mode<synchronous>, transform_indices = @transform_3, window_bounds = array<i64: 2, 64>}, {pipeline_mode = #tpu.pipeline_mode<synchronous>, transform_indices = @transform_4, window_bounds = array<i64: 1, 128>}, {transform_indices = @transform_5, window_bounds = array<i64: 8, 128>}, {transform_indices = @transform_6, window_bounds = array<i64: 8, 128>}]} {
    %c0 = arith.constant 0 : index
    %c0_0 = arith.constant 0 : index
    %0 = vector.load %arg1[%c0, %c0_0] : memref<8x4xf32, #tpu.memory_space<vmem>>, vector<8x4xf32>
    %c0_1 = arith.constant 0 : index
    %c0_2 = arith.constant 0 : index
    %1 = vector.load %arg3[%c0_1, %c0_2] : memref<1x64xf32, #tpu.memory_space<vmem>>, vector<1x64xf32>
    %2 = vector.shape_cast %1 : vector<1x64xf32> to vector<1x64xf32>
    %3 = vector.broadcast %2 : vector<1x64xf32> to vector<8x64xf32>
    %4 = vector.extract_strided_slice %0 {offsets = [0, 0], sizes = [8, 1], strides = [1, 1]} : vector<8x4xf32> to vector<8x1xf32>
    %c0_3 = arith.constant 0 : index
    %c0_4 = arith.constant 0 : index
    %5 = vector.load %arg2[%c0_3, %c0_4] : memref<4x64xf32, #tpu.memory_space<vmem>>, vector<1x64xf32>
    %6 = vector.broadcast %4 : vector<8x1xf32> to vector<8x64xf32>
    %7 = vector.broadcast %5 : vector<1x64xf32> to vector<8x64xf32>
    %8 = arith.mulf %6, %7 : vector<8x64xf32>
    %9 = arith.addf %3, %8 : vector<8x64xf32>
    %10 = vector.extract_strided_slice %0 {offsets = [0, 1], sizes = [8, 1], strides = [1, 1]} : vector<8x4xf32> to vector<8x1xf32>
    %c1 = arith.constant 1 : index
    %c0_5 = arith.constant 0 : index
    %11 = vector.load %arg2[%c1, %c0_5] : memref<4x64xf32, #tpu.memory_space<vmem>>, vector<1x64xf32>
    %12 = vector.broadcast %10 : vector<8x1xf32> to vector<8x64xf32>
    %13 = vector.broadcast %11 : vector<1x64xf32> to vector<8x64xf32>
    %14 = arith.mulf %12, %13 : vector<8x64xf32>
    %15 = arith.addf %9, %14 : vector<8x64xf32>
    %16 = vector.extract_strided_slice %0 {offsets = [0, 2], sizes = [8, 1], strides = [1, 1]} : vector<8x4xf32> to vector<8x1xf32>
    %c2 = arith.constant 2 : index
    %c0_6 = arith.constant 0 : index
    %17 = vector.load %arg2[%c2, %c0_6] : memref<4x64xf32, #tpu.memory_space<vmem>>, vector<1x64xf32>
    %18 = vector.broadcast %16 : vector<8x1xf32> to vector<8x64xf32>
    %19 = vector.broadcast %17 : vector<1x64xf32> to vector<8x64xf32>
    %20 = arith.mulf %18, %19 : vector<8x64xf32>
    %21 = arith.addf %15, %20 : vector<8x64xf32>
    %22 = vector.extract_strided_slice %0 {offsets = [0, 3], sizes = [8, 1], strides = [1, 1]} : vector<8x4xf32> to vector<8x1xf32>
    %c3 = arith.constant 3 : index
    %c0_7 = arith.constant 0 : index
    %23 = vector.load %arg2[%c3, %c0_7] : memref<4x64xf32, #tpu.memory_space<vmem>>, vector<1x64xf32>
    %24 = vector.broadcast %22 : vector<8x1xf32> to vector<8x64xf32>
    %25 = vector.broadcast %23 : vector<1x64xf32> to vector<8x64xf32>
    %26 = arith.mulf %24, %25 : vector<8x64xf32>
    %27 = arith.addf %21, %26 : vector<8x64xf32>
    %28 = math.tanh %27 : vector<8x64xf32>
    %29 = tpu.iota {dimensions = array<i32: 1>} : vector<8x128xi32>
    %c0_8 = arith.constant 0 : index
    %c0_9 = arith.constant 0 : index
    %30 = vector.load %arg5[%c0_8, %c0_9] : memref<1x128xf32, #tpu.memory_space<vmem>>, vector<1x128xf32>
    %31 = vector.shape_cast %30 : vector<1x128xf32> to vector<1x128xf32>
    %32 = vector.broadcast %31 : vector<1x128xf32> to vector<8x128xf32>
    %c0_10 = arith.constant 0 : index
    %c0_11 = arith.constant 0 : index
    %33 = vector.load %arg4[%c0_10, %c0_11] : memref<2x64xf32, #tpu.memory_space<vmem>>, vector<1x64xf32>
    %34 = vector.broadcast %33 : vector<1x64xf32> to vector<8x64xf32>
    %35 = arith.mulf %28, %34 : vector<8x64xf32>
    %cst = arith.constant dense<0.000000e+00> : vector<8xf32>
    %36 = vector.multi_reduction <add>, %35, %cst [1] : vector<8x64xf32> to vector<8xf32>
    %37 = vector.shape_cast %36 : vector<8xf32> to vector<8x1xf32>
    %c0_i32 = arith.constant 0 : i32
    %38 = vector.broadcast %c0_i32 : i32 to vector<8x128xi32>
    %39 = arith.cmpi eq, %29, %38 : vector<8x128xi32>
    %cst_12 = arith.constant 0.000000e+00 : f32
    %40 = vector.shape_cast %37 : vector<8x1xf32> to vector<8x1xf32>
    %41 = vector.broadcast %40 : vector<8x1xf32> to vector<8x128xf32>
    %42 = vector.broadcast %cst_12 : f32 to vector<8x128xf32>
    %43 = arith.select %39, %41, %42 : vector<8x128xi1>, vector<8x128xf32>
    %44 = arith.addf %32, %43 : vector<8x128xf32>
    %c1_13 = arith.constant 1 : index
    %c0_14 = arith.constant 0 : index
    %45 = vector.load %arg4[%c1_13, %c0_14] : memref<2x64xf32, #tpu.memory_space<vmem>>, vector<1x64xf32>
    %46 = vector.broadcast %45 : vector<1x64xf32> to vector<8x64xf32>
    %47 = arith.mulf %28, %46 : vector<8x64xf32>
    %cst_15 = arith.constant dense<0.000000e+00> : vector<8xf32>
    %48 = vector.multi_reduction <add>, %47, %cst_15 [1] : vector<8x64xf32> to vector<8xf32>
    %49 = vector.shape_cast %48 : vector<8xf32> to vector<8x1xf32>
    %c1_i32 = arith.constant 1 : i32
    %50 = vector.broadcast %c1_i32 : i32 to vector<8x128xi32>
    %51 = arith.cmpi eq, %29, %50 : vector<8x128xi32>
    %cst_16 = arith.constant 0.000000e+00 : f32
    %52 = vector.shape_cast %49 : vector<8x1xf32> to vector<8x1xf32>
    %53 = vector.broadcast %52 : vector<8x1xf32> to vector<8x128xf32>
    %54 = vector.broadcast %cst_16 : f32 to vector<8x128xf32>
    %55 = arith.select %51, %53, %54 : vector<8x128xi1>, vector<8x128xf32>
    %56 = arith.addf %44, %55 : vector<8x128xf32>
    %c0_17 = arith.constant 0 : index
    %c0_18 = arith.constant 0 : index
    %57 = vector.load %arg6[%c0_17, %c0_18] : memref<8x128xf32, #tpu.memory_space<vmem>>, vector<8x128xf32>
    tpu.vector_store %arg6[%c0_17, %c0_18], %56 {strides = array<i32>} : memref<8x128xf32, #tpu.memory_space<vmem>>, vector<8x128xf32>,
    %c2_i32 = arith.constant 2 : i32
    %58 = vector.broadcast %c2_i32 : i32 to vector<8x128xi32>
    %59 = arith.cmpi slt, %29, %58 : vector<8x128xi32>
    %cst_19 = arith.constant 0xFF800000 : f32
    %60 = vector.broadcast %cst_19 : f32 to vector<8x128xf32>
    %61 = arith.select %59, %56, %60 : vector<8x128xi1>, vector<8x128xf32>
    %cst_20 = arith.constant dense<0xFF800000> : vector<8xf32>
    %62 = vector.multi_reduction <maximumf>, %61, %cst_20 [1] : vector<8x128xf32> to vector<8xf32>
    %63 = vector.shape_cast %62 : vector<8xf32> to vector<8x1xf32>
    %64 = vector.broadcast %63 : vector<8x1xf32> to vector<8x128xf32>
    %65 = arith.cmpf oeq, %61, %64 : vector<8x128xf32>
    %c2_i32_21 = arith.constant 2 : i32
    %66 = vector.broadcast %c2_i32_21 : i32 to vector<8x128xi32>
    %67 = arith.cmpi slt, %29, %66 : vector<8x128xi32>
    %68 = arith.andi %65, %67 : vector<8x128xi1>
    %c128_i32 = arith.constant 128 : i32
    %69 = vector.broadcast %c128_i32 : i32 to vector<8x128xi32>
    %70 = arith.select %68, %29, %69 : vector<8x128xi1>, vector<8x128xi32>
    %cst_22 = arith.constant dense<2147483647> : vector<8xi32>
    %71 = vector.multi_reduction <minsi>, %70, %cst_22 [1] : vector<8x128xi32> to vector<8xi32>
    %72 = vector.shape_cast %71 : vector<8xi32> to vector<8x1xi32>
    %73 = vector.shape_cast %72 : vector<8x1xi32> to vector<8x1xi32>
    %74 = vector.broadcast %73 : vector<8x1xi32> to vector<8x128xi32>
    %c0_23 = arith.constant 0 : index
    %c0_24 = arith.constant 0 : index
    %75 = vector.load %arg7[%c0_23, %c0_24] : memref<8x128xi32, #tpu.memory_space<vmem>>, vector<8x128xi32>
    tpu.vector_store %arg7[%c0_23, %c0_24], %74 {strides = array<i32>} : memref<8x128xi32, #tpu.memory_space<vmem>>, vector<8x128xi32>,
    return
  }
  func.func @transform_0(%arg0: i32) -> (i32, i32) {
    %c0_i32 = arith.constant 0 : i32
    %c0_i32_0 = arith.constant 0 : i32
    return %arg0, %c0_i32 : i32, i32
  }
  func.func @transform_1(%arg0: i32) -> (i32, i32) {
    %c0_i32 = arith.constant 0 : i32
    %c0_i32_0 = arith.constant 0 : i32
    %c0_i32_1 = arith.constant 0 : i32
    return %c0_i32, %c0_i32_0 : i32, i32
  }
  func.func @transform_2(%arg0: i32) -> (i32, i32) {
    %c0_i32 = arith.constant 0 : i32
    %c0_i32_0 = arith.constant 0 : i32
    %c0_i32_1 = arith.constant 0 : i32
    return %c0_i32, %c0_i32_0 : i32, i32
  }
  func.func @transform_3(%arg0: i32) -> (i32, i32) {
    %c0_i32 = arith.constant 0 : i32
    %c0_i32_0 = arith.constant 0 : i32
    %c0_i32_1 = arith.constant 0 : i32
    return %c0_i32, %c0_i32_0 : i32, i32
  }
  func.func @transform_4(%arg0: i32) -> (i32, i32) {
    %c0_i32 = arith.constant 0 : i32
    %c0_i32_0 = arith.constant 0 : i32
    %c0_i32_1 = arith.constant 0 : i32
    return %c0_i32, %c0_i32_0 : i32, i32
  }
  func.func @transform_5(%arg0: i32) -> (i32, i32) {
    %c0_i32 = arith.constant 0 : i32
    %c0_i32_0 = arith.constant 0 : i32
    return %arg0, %c0_i32 : i32, i32
  }
  func.func @transform_6(%arg0: i32) -> (i32, i32) {
    %c0_i32 = arith.constant 0 : i32
    %c0_i32_0 = arith.constant 0 : i32
    return %arg0, %c0_i32 : i32, i32
  }
}

</mosaic_0001>

<llo_original>
// kernel: net_forward.1
$region0: #{net_forward.1}
  #allocation0 [shape = 'u32[]', space=smem, size = 0x4, offset = 0x4, fixed_abs, tag = 'smem constant byte address 0x4 - core index']
  #allocation1 [shape = 'u32[144,128]{1,0:T(1,128)}', space=vmem, size = 0x12000, scoped, tag = 'internal scratch']
  %s0 = inlined_call_operand.vmem [shape: f32[8,4], index: 0, kind: input, shape index: {}]
  %s1 = inlined_call_operand.vmem [shape: f32[4,64], index: 1, kind: input, shape index: {}]
  %s2 = inlined_call_operand.vmem [shape: f32[1,64], index: 2, kind: input, shape index: {}]
  %s3 = inlined_call_operand.vmem [shape: f32[2,64], index: 3, kind: input, shape index: {}]
  %s4 = inlined_call_operand.vmem [shape: f32[1,128], index: 4, kind: input, shape index: {}]
  %s5 = inlined_call_operand.vmem [shape: f32[8,128], index: 5, kind: output, shape index: {0}]
  %s6 = inlined_call_operand.vmem [shape: s32[8,128], index: 6, kind: output, shape index: {1}]
  %7 = xla_tuple %s5, %s6
  %s8 = sld [smem:[#allocation0]]
  $region38: #{net_forward.1} parent=0
    _
  %s10 = ssub.s32 1, %s8
  %s11 = scalar_select 0, %s10, %s8
  // Predicated region
  $region2: #{net_forward.1} parent=0 // pred_check
    _
  $region3: #{net_forward.1} parent=0 // pred_check_branch
    %13 = sbr.rel (0) target = $region5
  $region4: #{net_forward.1} parent=0 // pred_region
    _
  $region5: #{net_forward.1} parent=0 // pred_fallthru
    _
  // Predicated region
  $region6: #{net_forward.1} parent=0 // pred_check
    _
  $region7: #{net_forward.1} parent=0 // pred_check_branch
    %15 = sbr.rel (0) target = $region9
  $region8: #{net_forward.1} parent=0 // pred_region
    _
  $region9: #{net_forward.1} parent=0 // pred_fallthru
    _
  // Predicated region
  $region10: #{net_forward.1} parent=0 // pred_check
    _
  $region11: #{net_forward.1} parent=0 // pred_check_branch
    %17 = sbr.rel (0) target = $region13
  $region12: #{net_forward.1} parent=0 // pred_region
    _
  $region13: #{net_forward.1} parent=0 // pred_fallthru
    _
  // Predicated region
  $region14: #{net_forward.1} parent=0 // pred_check
    _
  $region15: #{net_forward.1} parent=0 // pred_check_branch
    %19 = sbr.rel (0) target = $region17
  $region16: #{net_forward.1} parent=0 // pred_region
    _
  $region17: #{net_forward.1} parent=0 // pred_fallthru
    _
  // Predicated region
  $region18: #{net_forward.1} parent=0 // pred_check
    _
  $region19: #{net_forward.1} parent=0 // pred_check_branch
    %21 = sbr.rel (0) target = $region21
  $region20: #{net_forward.1} parent=0 // pred_region
    _
  $region21: #{net_forward.1} parent=0 // pred_fallthru
    _
  %v22 = vld [vmem:[%s0] sm:$0xff]
  %v23 = vld [vmem:[%s2] sm:$0x1]
  %v25 = vlaneseq
  %v26 = vshrl.u32 %v25, 7
  %v27 = vsub.s32 0, %v26
  %v28 = vrot.slane %v23, %v27
  %v30 = vld [vmem:[%s1] sm:$0x1]
  %32 = vset.pattern.permute.xlu0 0
  %33 = vperm.xlu0 %32, %v22
  %v34 = vpop.permute.xlu0 %33
  %v36 = vlaneseq
  %v37 = vshrl.u32 %v36, 7
  %v38 = vsub.s32 0, %v37
  %v39 = vrot.slane %v30, %v38
  %v40 = vmul.f32 %v34, %v39
  %v41 = vadd.f32 %v28, %v40
  %v42 = vld [vmem:[%s1 + $0x1] sm:$0x1]
  %43 = vset.pattern.permute.xlu0 1
  %44 = vperm.xlu0 %43, %v22
  %v45 = vpop.permute.xlu0 %44
  %v47 = vlaneseq
  %v48 = vshrl.u32 %v47, 7
  %v49 = vsub.s32 0, %v48
  %v50 = vrot.slane %v42, %v49
  %v51 = vmul.f32 %v45, %v50
  %v52 = vadd.f32 %v41, %v51
  %v53 = vld [vmem:[%s1 + $0x2] sm:$0x1]
  %54 = vset.pattern.permute.xlu0 2
  %55 = vperm.xlu0 %54, %v22
  %v56 = vpop.permute.xlu0 %55
  %v58 = vlaneseq
  %v59 = vshrl.u32 %v58, 7
  %v60 = vsub.s32 0, %v59
  %v61 = vrot.slane %v53, %v60
  %v62 = vmul.f32 %v56, %v61
  %v63 = vadd.f32 %v52, %v62
  %v64 = vld [vmem:[%s1 + $0x3] sm:$0x1]
  %65 = vset.pattern.permute.xlu0 3
  %66 = vperm.xlu0 %65, %v22
  %v67 = vpop.permute.xlu0 %66
  %v69 = vlaneseq
  %v70 = vshrl.u32 %v69, 7
  %v71 = vsub.s32 0, %v70
  %v72 = vrot.slane %v64, %v71
  %v73 = vmul.f32 %v67, %v72
  %v74 = vadd.f32 %v63, %v73
  %v75 = vtanh.pop %v74
  %v76 = vlaneseq
  %v77 = vand.u32 %v76, 127
  %v78 = vld [vmem:[%s4] sm:$0x1]
  %v80 = vlaneseq
  %v81 = vshrl.u32 %v80, 7
  %v82 = vsub.s32 0, %v81
  %v83 = vrot.slane %v78, %v82
  %v85 = vld [vmem:[%s3] sm:$0x1]
  %v86 = vlaneseq
  %v87 = vshrl.u32 %v86, 7
  %v88 = vsub.s32 0, %v87
  %v89 = vrot.slane %v85, %v88
  %v90 = vmul.f32 %v75, %v89
  %vm91 = vcmask 523264
  %v92 = vsel %vm91, %v90, 0.0
  %93 = vadd.xlane.f32.xlu0 %v92
  %v94 = vpop.xlane.xlu0 %93
  %vm95 = vcmp.eq.s32.totalorder %v77, 0
  %v96 = vsel %vm95, %v94, 0.0
  %v97 = vadd.f32 %v83, %v96
  %v98 = vld [vmem:[%s3 + $0x1] sm:$0x1]
  %v99 = vlaneseq
  %v100 = vshrl.u32 %v99, 7
  %v101 = vsub.s32 0, %v100
  %v102 = vrot.slane %v98, %v101
  %v103 = vmul.f32 %v75, %v102
  %v104 = vsel %vm91, %v103, 0.0
  %105 = vadd.xlane.f32.xlu0 %v104
  %v106 = vpop.xlane.xlu0 %105
  %vm107 = vcmp.eq.s32.totalorder %v77, 1
  %v108 = vsel %vm107, %v106, 0.0
  %v109 = vadd.f32 %v97, %v108
  %110 = vst [vmem:[%s5] sm:$0xff] %v109
  %vm111 = vcmp.lt.s32.totalorder %v77, 2
  %v112 = vsel %vm111, %v109, -inf
  %113 = vmax.xlane.f32.xlu0 %v112
  %v114 = vpop.xlane.xlu0 %113
  %vm115 = vcmp.eq.f32.partialorder %v112, %v114
  %vm116 = vmand %vm115, %vm111
  %v117 = vsel %vm116, %v77, 128
  %v118 = vand.u32 %v117, 65535
  %v119 = vshra.s32 %v117, 16
  %v120 = vcvt.s32.f32 %v118
  %v121 = vcvt.s32.f32 %v119
  %122 = vmin.xlane.f32.xlu0 %v121
  %v123 = vpop.xlane.xlu0 %122
  %vm124 = vcmp.eq.f32.partialorder %v121, %v123
  %v125 = vsel %vm124, %v120, inf
  %126 = vmin.xlane.f32.xlu0 %v125
  %v127 = vpop.xlane.xlu0 %126
  %v128 = vcvt.f32.s32 %v127
  %v129 = vcvt.f32.s32 %v123
  %v130 = vshll.u32 %v129, 16
  %v131 = vadd.s32 %v130, %v128
  %132 = vst [vmem:[%s6] sm:$0xff] %v131
  // Predicated region
  $region22: #{net_forward.1} parent=0 // pred_check
    _
  $region23: #{net_forward.1} parent=0 // pred_check_branch
    %134 = sbr.rel (0) target = $region25
  $region24: #{net_forward.1} parent=0 // pred_region
    _
  $region25: #{net_forward.1} parent=0 // pred_fallthru
    _
  // Predicated region
  $region26: #{net_forward.1} parent=0 // pred_check
    _
  $region27: #{net_forward.1} parent=0 // pred_check_branch
    %136 = sbr.rel (0) target = $region29
  $region28: #{net_forward.1} parent=0 // pred_region
    _
  $region29: #{net_forward.1} parent=0 // pred_fallthru
    _
  // Predicated region
  $region30: #{net_forward.1} parent=0 // pred_check
    _
  $region31: #{net_forward.1} parent=0 // pred_check_branch
    %138 = sbr.rel (0) target = $region33
  $region32: #{net_forward.1} parent=0 // pred_region
    _
  $region33: #{net_forward.1} parent=0 // pred_fallthru
    _
  // Predicated region
  $region34: #{net_forward.1} parent=0 // pred_check
    _
  $region35: #{net_forward.1} parent=0 // pred_check_branch
    %140 = sbr.rel (0) target = $region37
  $region36: #{net_forward.1} parent=0 // pred_region
    _
  $region37: #{net_forward.1} parent=0 // pred_fallthru
    _

</llo_original>
